<compile_context>
chip_gen: v5e
topology: v5e:2x2
jax: 0.10.0
libtpu: 0.0.40
codegen_flags: <defaults>
</compile_context>

<pallas_src>
import jax
import jax.numpy as jnp
from jax.experimental import pallas as pl
from jax.experimental.pallas import tpu as pltpu


def _patch_embed_kernel(x_ref, w_ref, b_ref, o_ref):
    # x_ref: (tm, K) bf16   patches tile
    # w_ref: (K,  n) bf16   flattened conv weight (n = E on the resident path)
    # b_ref: (1,  n) f32    bias
    # o_ref: (tm, n)        output tile
    acc = jnp.dot(x_ref[...], w_ref[...], preferred_element_type=jnp.float32)
    o_ref[...] = (acc + b_ref[...]).astype(o_ref.dtype)


def _round_up(n, m):
    return ((n + m - 1) // m) * m


def _vmem_capacity_bytes():
    """Physical VMEM capacity of the current chip (conservative fallback)."""
    try:
        cap = getattr(pltpu.get_tpu_info(), "vmem_capacity_bytes", None)
        if cap:
            return int(cap)
    except Exception:
        pass
    return 64 * 1024 * 1024  # size for the smallest-VMEM generation (v7x)


def _is_v5e():
    try:
        kind = jax.devices()[0].device_kind.lower()
        return ("v5 lite" in kind) or ("v5e" in kind)
    except Exception:
        return False


def _pick_tile_m(M, K, n_block, in_bytes, out_bytes, budget_bytes, *, min_m_tiles=4):
    """Largest M tile whose double-buffered working set fits `budget_bytes`.

    Working set = 2*(tm*K*in + tm*n*out)   [x tile + out tile, double-buffered]
                + 2*(K*n*in + n*4)         [weight + bias buffers]
    """
    fixed = 2 * (K * n_block * in_bytes + n_block * 4)
    per_row = 2 * (K * in_bytes + n_block * out_bytes)
    tm = max(budget_bytes - fixed, 16 * per_row) // per_row
    tm = int(max(16, min(tm, 4096)))
    tm = (tm // 16) * 16                       # bf16 sublane-friendly
    # Keep >= min_m_tiles grid steps when M is large enough (v7x has 2
    # TensorCores; the pipeline also needs something to overlap), but never
    # shrink below 128 rows just for that.
    cap = max(128, _round_up(-(-M // min_m_tiles), 16))
    tm = min(tm, cap)
    tm = min(tm, _round_up(M, 16))             # don't exceed (rounded-up) M
    return max(tm, 16)


def patch_embed(x, weight, bias, patch_size, *, compute_dtype=jnp.bfloat16,
                out_dtype=None):
    """x: (B, C, H, W) NCHW; weight: (E, C, P, P); bias: (E,).

    Returns (B, num_patches, E), matching PatchEmbed.forward
    (`proj(x).flatten(2).transpose(1, 2)`).  Default output dtype is x.dtype
    (PyTorch parity); pass out_dtype=jnp.bfloat16 to halve output HBM traffic
    when the consumer takes bf16 anyway.
    """
    B, C, H, W = x.shape
    P = patch_size
    E = weight.shape[0]
    gh, gw = H // P, W // P
    num_patches = gh * gw
    out_dtype = x.dtype if out_dtype is None else jnp.dtype(out_dtype)

    # ---- glue: patch extraction (no FLOPs); cast first so the transpose moves
    # bf16, not f32.  TODO(synk): fuse into the kernel (see header).
    xc = x.astype(compute_dtype)
    patches = xc.reshape(B, C, gh, P, gw, P)
    patches = patches.transpose(0, 2, 4, 1, 3, 5)           # (B, gh, gw, C, P, P)
    patches = patches.reshape(B * num_patches, C * P * P)    # (M, K)

    w_flat = weight.reshape(E, C * P * P).T.astype(compute_dtype)  # (K, E)
    b_row = bias.astype(jnp.float32).reshape(1, E)

    M, K = patches.shape
    in_b = jnp.dtype(compute_dtype).itemsize
    out_b = jnp.dtype(out_dtype).itemsize

    # ---- generation-aware VMEM budget: ~64 MiB working set on v5e/v6e
    # (128 MiB VMEM), ~32 MiB on v7x (64 MiB VMEM).
    cap = _vmem_capacity_bytes()
    budget = min(cap // 2, 64 * 1024 * 1024)
    vmem_limit = int(min(int(cap * 0.7), 96 * 1024 * 1024))

    cost = pl.CostEstimate(
        flops=2 * M * K * E,
        transcendentals=0,
        bytes_accessed=M * K * in_b + K * E * in_b + M * E * out_b + E * 4,
    )

    weight_buf_bytes = 2 * (K * E * in_b + E * 4)   # double-buffered resident weight

    if weight_buf_bytes <= budget // 3:
        # ---- Path A (all standard ViT dims): weight resident for the whole
        # call (constant index_map -> fetched once), single parallel M axis.
        tm = _pick_tile_m(M, K, E, in_b, out_b, budget)
        grid = (pl.cdiv(M, tm),)
        out = pl.pallas_call(
            _patch_embed_kernel,
            out_shape=jax.ShapeDtypeStruct((M, E), out_dtype),
            grid_spec=pltpu.PrefetchScalarGridSpec(
                num_scalar_prefetch=0,
                grid=grid,
                in_specs=[
                    pl.BlockSpec((tm, K), lambda i: (i, 0)),
                    pl.BlockSpec((K, E), lambda i: (0, 0)),   # resident weight
                    pl.BlockSpec((1, E), lambda i: (0, 0)),
                ],
                out_specs=pl.BlockSpec((tm, E), lambda i: (i, 0)),
            ),
            compiler_params=pltpu.CompilerParams(
                dimension_semantics=("parallel",),
                vmem_limit_bytes=vmem_limit,
            ),
            cost_estimate=cost,
        )(patches, w_flat, b_row)
    else:
        # ---- Path B (rare, very large K*E): tile E; M is innermost so the
        # current weight block is reused across all M steps before moving on.
        if (not _is_v5e()) and E % 256 == 0:
            tn = 256                       # v6e/v7x 256-wide MXU
        elif E % 128 == 0:
            tn = 128                       # v5e native width / non-256 E
        else:
            tn = min(E, 128)
        tm = _pick_tile_m(M, K, tn, in_b, out_b, budget)
        grid = (pl.cdiv(E, tn), pl.cdiv(M, tm))
        out = pl.pallas_call(
            _patch_embed_kernel,
            out_shape=jax.ShapeDtypeStruct((M, E), out_dtype),
            grid_spec=pltpu.PrefetchScalarGridSpec(
                num_scalar_prefetch=0,
                grid=grid,
                in_specs=[
                    pl.BlockSpec((tm, K), lambda j, i: (i, 0)),
                    pl.BlockSpec((K, tn), lambda j, i: (0, j)),
                    pl.BlockSpec((1, tn), lambda j, i: (0, j)),
                ],
                out_specs=pl.BlockSpec((tm, tn), lambda j, i: (i, j)),
            ),
            compiler_params=pltpu.CompilerParams(
                dimension_semantics=("parallel", "parallel"),
                vmem_limit_bytes=vmem_limit,
            ),
            cost_estimate=cost,
        )(patches, w_flat, b_row)

    return out.reshape(B, num_patches, E)


if __name__ == "__main__":
    # Small shapes consistent with the module: img_size=16, patch_size=4,
    # in_chans=4, embed_dim=32 -> num_patches = (16//4)**2 = 16.
    B, C, H, W = 2, 4, 16, 16
    P = 4
    E = 32

    key = jax.random.PRNGKey(0)
    kx, kw, kb = jax.random.split(key, 3)

    x = jax.random.normal(kx, (B, C, H, W), dtype=jnp.float32)
    weight = jax.random.normal(kw, (E, C, P, P), dtype=jnp.float32) * 0.02
    bias = jax.random.normal(kb, (E,), dtype=jnp.float32) * 0.02

    # jit so the cast+transpose glue fuses into one HBM pass.
    pe = jax.jit(patch_embed, static_argnums=(3,))
    out = jax.block_until_ready(pe(x, weight, bias, P))
    assert out.shape == (B, (H // P) * (W // P), E)

    # reference: strided conv with the same bf16 operands / f32 accumulation
    ref = jax.lax.conv_general_dilated(
        x.astype(jnp.bfloat16), weight.astype(jnp.bfloat16),
        window_strides=(P, P), padding="VALID",
        dimension_numbers=("NCHW", "OIHW", "NCHW"),
        preferred_element_type=jnp.float32,
    ) + bias.reshape(1, E, 1, 1)
    ref = ref.reshape(B, E, -1).transpose(0, 2, 1)
    assert jnp.allclose(out, ref.astype(out.dtype), atol=1e-3, rtol=1e-3), (
        float(jnp.max(jnp.abs(out - ref.astype(out.dtype)))))

    print("KERNEL_OK")
</pallas_src>

<mosaic_0001>
module attributes {stable_mosaic.version = 11 : i64} {
  func.func @_patch_embed_kernel(%arg0: i32, %arg1: memref<32x64xbf16, #tpu.memory_space<vmem>>, %arg2: memref<64x32xbf16, #tpu.memory_space<vmem>>, %arg3: memref<1x32xf32, #tpu.memory_space<vmem>>, %arg4: memref<32x32xf32, #tpu.memory_space<vmem>>) attributes {dimension_semantics = [#tpu.dimension_semantics<parallel>], iteration_bounds = array<i64: 1>, scalar_prefetch = 0 : i64, scratch_operands = 0 : i64, tpu.core_type = #tpu.core_type<tc>, window_params = [{transform_indices = @transform_0, window_bounds = array<i64: 32, 64>}, {pipeline_mode = #tpu.pipeline_mode<synchronous>, transform_indices = @transform_1, window_bounds = array<i64: 64, 32>}, {pipeline_mode = #tpu.pipeline_mode<synchronous>, transform_indices = @transform_2, window_bounds = array<i64: 1, 32>}, {transform_indices = @transform_3, window_bounds = array<i64: 32, 32>}]} {
    %c0 = arith.constant 0 : index
    %c0_0 = arith.constant 0 : index
    %0 = vector.load %arg1[%c0, %c0_0] : memref<32x64xbf16, #tpu.memory_space<vmem>>, vector<32x64xbf16>
    %c0_1 = arith.constant 0 : index
    %c0_2 = arith.constant 0 : index
    %1 = vector.load %arg2[%c0_1, %c0_2] : memref<64x32xbf16, #tpu.memory_space<vmem>>, vector<64x32xbf16>
    %cst = arith.constant dense<0.000000e+00> : vector<32x32xf32>
    %2 = tpu.matmul %0, %1, %cst {dimension_numbers = #tpu.dot_dimension_numbers<[1], [0], [0], [1], [0, 0, 1, 1], [], []>} : vector<32x64xbf16>, vector<64x32xbf16>, vector<32x32xf32> -> vector<32x32xf32>
    %c0_3 = arith.constant 0 : index
    %c0_4 = arith.constant 0 : index
    %3 = vector.load %arg3[%c0_3, %c0_4] : memref<1x32xf32, #tpu.memory_space<vmem>>, vector<1x32xf32>
    %4 = vector.broadcast %3 : vector<1x32xf32> to vector<32x32xf32>
    %5 = arith.addf %2, %4 : vector<32x32xf32>
    %c0_5 = arith.constant 0 : index
    %c0_6 = arith.constant 0 : index
    %6 = vector.load %arg4[%c0_5, %c0_6] : memref<32x32xf32, #tpu.memory_space<vmem>>, vector<32x32xf32>
    tpu.vector_store %arg4[%c0_5, %c0_6], %5 {strides = array<i32>} : memref<32x32xf32, #tpu.memory_space<vmem>>, vector<32x32xf32>,
    return
  }
  func.func @transform_0(%arg0: i32) -> (i32, i32) {
    %c0_i32 = arith.constant 0 : i32
    %c0_i32_0 = arith.constant 0 : i32
    return %arg0, %c0_i32 : i32, i32
  }
  func.func @transform_1(%arg0: i32) -> (i32, i32) {
    %c0_i32 = arith.constant 0 : i32
    %c0_i32_0 = arith.constant 0 : i32
    %c0_i32_1 = arith.constant 0 : i32
    return %c0_i32, %c0_i32_0 : i32, i32
  }
  func.func @transform_2(%arg0: i32) -> (i32, i32) {
    %c0_i32 = arith.constant 0 : i32
    %c0_i32_0 = arith.constant 0 : i32
    %c0_i32_1 = arith.constant 0 : i32
    return %c0_i32, %c0_i32_0 : i32, i32
  }
  func.func @transform_3(%arg0: i32) -> (i32, i32) {
    %c0_i32 = arith.constant 0 : i32
    %c0_i32_0 = arith.constant 0 : i32
    return %arg0, %c0_i32 : i32, i32
  }
}

</mosaic_0001>

<llo_original>
// kernel: patch_embed.1
$region0: #{patch_embed.1}
  #allocation0 [shape = 'u32[]', space=smem, size = 0x4, offset = 0x4, fixed_abs, tag = 'smem constant byte address 0x4 - core index']
  #allocation1 [shape = 'u32[72,128]{1,0:T(1,128)}', space=vmem, size = 0x9000, scoped, tag = 'internal scratch']
  %s0 = inlined_call_operand.vmem [shape: bf16[32,64], index: 0, kind: input, shape index: {}]
  %s1 = inlined_call_operand.vmem [shape: bf16[64,32], index: 1, kind: input, shape index: {}]
  %s2 = inlined_call_operand.vmem [shape: f32[1,32], index: 2, kind: input, shape index: {}]
  %s3 = inlined_call_operand.hbm [shape: f32[32,32], index: 3, kind: output, shape index: {}]
  %s4 = sld [smem:[#allocation0]]
  $region22: #{patch_embed.1} parent=0
    _
  %s6 = ssub.s32 1, %s4
  %s7 = scalar_select 0, %s6, %s4
  $region1: #{patch_embed.1} parent=0
    #allocation2 [shape = 'u8[16384]{0}', space=vmem, size = 0x4000, scoped, tag = 'output window, operand 0, single buffered']
    #allocation3 [shape = 's32[1]{0}', space=sflag, size = 0x4, scoped, tag = 'scoped memory for patch_embed.1']
    %8 = vsyncpa [#allocation3], 0
    // Predicated region
    $region2: #{patch_embed.1} parent=1 // pred_check
      _
    $region3: #{patch_embed.1} parent=1 // pred_check_branch
      %10 = sbr.rel (0) target = $region5
    $region4: #{patch_embed.1} parent=1 // pred_region
      _
    $region5: #{patch_embed.1} parent=1 // pred_fallthru
      _
    // Predicated region
    $region6: #{patch_embed.1} parent=1 // pred_check
      _
    $region7: #{patch_embed.1} parent=1 // pred_check_branch
      %12 = sbr.rel (0) target = $region9
    $region8: #{patch_embed.1} parent=1 // pred_region
      _
    $region9: #{patch_embed.1} parent=1 // pred_fallthru
      _
    // Predicated region
    $region10: #{patch_embed.1} parent=1 // pred_check
      _
    $region11: #{patch_embed.1} parent=1 // pred_check_branch
      %14 = sbr.rel (0) target = $region13
    $region12: #{patch_embed.1} parent=1 // pred_region
      _
    $region13: #{patch_embed.1} parent=1 // pred_fallthru
      _
    %v16 = vld [vmem:[%s0] sm:$0xf]
    %v17 = vld [vmem:[%s0 + $0x4] sm:$0xf]
    %v18 = vld [vmem:[%s0 + $0x8] sm:$0xf]
    %v19 = vld [vmem:[%s0 + $0xc] sm:$0xf]
    %v20 = vld [vmem:[%s1] sm:$0xf]
    %v21 = vld [vmem:[%s1 + $0x4] sm:$0xf]
    %v22 = vld [vmem:[%s1 + $0x8] sm:$0xf]
    %v23 = vld [vmem:[%s1 + $0xc] sm:$0xf]
    %v24 = vld [vmem:[%s1 + $0x10] sm:$0xf]
    %v25 = vld [vmem:[%s1 + $0x14] sm:$0xf]
    %v26 = vld [vmem:[%s1 + $0x18] sm:$0xf]
    %v27 = vld [vmem:[%s1 + $0x1c] sm:$0xf]
    %v28 = vld [vmem:[%s2] sm:$0x1]
    %v30 = vperm.slane %v28, 0
    %v36 = vunpack.c.l.b16 %v16
    %v37 = vunpack.c.l.b16 %v17
    %v38 = vunpack.c.l.b16 %v18
    %v39 = vunpack.c.l.b16 %v19
    %v40 = vpack.c.b16 %v37, %v36
    %v41 = vpack.c.b16 %v39, %v38
    %v50 = vunpack.c.l.b16 %v20
    %v51 = vunpack.c.l.b16 %v21
    %v52 = vunpack.c.l.b16 %v22
    %v53 = vunpack.c.l.b16 %v23
    %v54 = vunpack.c.l.b16 %v24
    %v55 = vunpack.c.l.b16 %v25
    %v56 = vunpack.c.l.b16 %v26
    %v57 = vunpack.c.l.b16 %v27
    %v58 = vpack.c.b16 %v51, %v50
    %v59 = vpack.c.b16 %v53, %v52
    %v60 = vpack.c.b16 %v55, %v54
    %v61 = vpack.c.b16 %v57, %v56
    %vm66 = vcmask 523264
    %v68 = vsel %vm66, %v40, 0
    %v71 = vsel %vm66, %v41, 0
    %73 = vmatpush.bf16.msra.mxu0 0
    %74 = vmatpush.bf16.msra.mxu0 0
    %75 = vmatpush.bf16.msra.mxu0 0
    %76 = vmatpush.bf16.msra.mxu0 0
    %77 = vmatpush.bf16.msra.mxu0 %v61
    %78 = vmatpush.bf16.msra.mxu0 %v60
    %79 = vmatpush.bf16.msra.mxu0 %v59
    %80 = vmatpush.bf16.msra.mxu0 %v58
    %81 = vmatmul.bf16.gmra.mxu0 %v68
    %v82 = vpop.f32.mrf.mxu0
    %v83 = vadd.f32 %v30, %v82
    %v84 = vpop.f32.mrf.mxu0
    %v85 = vadd.f32 %v30, %v84
    %86 = vmatmul.bf16.gmra.mxu0 %v71
    %v87 = vpop.f32.mrf.mxu0
    %v88 = vadd.f32 %v30, %v87
    %v89 = vpop.f32.mrf.mxu0
    %v90 = vadd.f32 %v30, %v89
    %91 = vdwg.mxu0
    %vm92 = vcmask 261120
    %93 = vst.msk [vmem:[#allocation2] sm:$0xff] %vm92, %v83
    %94 = vst.msk [vmem:[#allocation2 + $0x8] sm:$0xff] %vm92, %v85
    %95 = vst.msk [vmem:[#allocation2 + $0x10] sm:$0xff] %vm92, %v88
    %96 = vst.msk [vmem:[#allocation2 + $0x18] sm:$0xff] %vm92, %v90
    // Predicated region
    $region14: #{patch_embed.1} parent=1 // pred_check
      _
    $region15: #{patch_embed.1} parent=1 // pred_check_branch
      %98 = sbr.rel (0) target = $region17
    $region16: #{patch_embed.1} parent=1 // pred_region
      %100 = vsyncadd [#allocation3], 0
      %s101 = sshll.u32 [#allocation2], 4
      %s102 = int_to_ptr.vmem [resolvable:$true] %s101
      %s103 = sshll.u32 %s3, 4
      %s104 = int_to_ptr.hbm [resolvable:$true] %s103
      %109 = dma.vmem_to_hbm [thread:$0]  %s102, 512, %s104, [#allocation3], 128, 128, 8
    $region17: #{patch_embed.1} parent=1 // pred_fallthru
      _
    // Predicated region
    $region18: #{patch_embed.1} parent=1 // pred_check
      _
    $region19: #{patch_embed.1} parent=1 // pred_check_branch
      %111 = sbr.rel (0) target = $region21
    $region20: #{patch_embed.1} parent=1 // pred_region
      %113 = dma.done [#allocation3], 512
    $region21: #{patch_embed.1} parent=1 // pred_fallthru
      _
    %114 = vsyncpa [#allocation3], 1

</llo_original>
